<compile_context>
chip_gen: v5e
topology: v5e:2x2
jax: 0.10.0
libtpu: 0.0.40
codegen_flags: <defaults>
</compile_context>

<pallas_src>
import jax
import jax.numpy as jnp
from jax.experimental import pallas as pl
from jax.experimental.pallas import tpu as pltpu


def rnn_attn_kernel(
    x_ref,      # (T*Bp, Dp)  time-major, flattened, zero-padded input (bf16)
    w_ih_ref,   # (Dp, H)     input->hidden, pre-transposed (bf16)
    w_hh_ref,   # (H, H)      hidden->hidden, pre-transposed (bf16)
    b_ref,      # (1, H)      b_ih + b_hh pre-summed (f32)
    w_att_ref,  # (1, H)      attention Linear(H, 1) weight row (f32)
    w1_ref,     # (H, F1)     fc1 weight, pre-transposed (bf16)
    b1_ref,     # (1, F1)     (f32)
    w2_ref,     # (F1, Op)    fc2 weight, pre-transposed, lane-padded (bf16)
    b2_ref,     # (1, Op)     (f32)
    out_ref,    # (Bp, Op)    (f32)
):
    B = out_ref.shape[0]
    H = w_hh_ref.shape[1]
    T = x_ref.shape[0] // B

    # ---- hoisted input projection: one MXU matmul over all timesteps ----
    pre = (
        jnp.dot(x_ref[...], w_ih_ref[...], preferred_element_type=jnp.float32)
        + b_ref[...]
    )                                                   # (T*B, H) f32, t-major rows

    w_hh = w_hh_ref[...]                                # (H, H) bf16, loop-invariant
    w_att = w_att_ref[...]                              # (1, H) f32

    # ---- t = 0 special-cased: skips the jnp.dot(zeros, W_hh) matmul ----
    h = jnp.tanh(pre[0:B, :])                           # (B, H) f32
    s = jnp.sum(h * w_att, axis=-1, keepdims=True)      # (B, 1) attention score
    m = s                                               # running max
    denom = jnp.ones((B, 1), jnp.float32)               # running sum of exp (= exp(0))
    ctx = h                                             # running weighted hidden sum

    # ---- recurrence, fully unrolled, with online softmax fused in ----
    # TODO(synk): dump the bundle (pl.lower_as_mlir / bundles_to_text) and verify
    # Mosaic hoists the loop-invariant W_hh push across the unrolled steps; if not,
    # switch to explicit pltpu.matmul_push_rhs / matmul_acc_lhs / matmul_pop to keep
    # W_hh resident in the MXU weight registers.
    for t in range(1, T):
        h = jnp.tanh(
            pre[t * B:(t + 1) * B, :]
            + jnp.dot(h.astype(w_hh.dtype), w_hh,
                      preferred_element_type=jnp.float32)
        )                                               # (B, H) f32
        s = jnp.sum(h * w_att, axis=-1, keepdims=True)  # (B, 1)
        m_new = jnp.maximum(m, s)
        alpha = jnp.exp(m - m_new)                      # rescale of old accumulators
        p = jnp.exp(s - m_new)                          # weight of the new step
        denom = alpha * denom + p
        ctx = alpha * ctx + p * h
        m = m_new

    # softmax normalization: EUP reciprocal + VPU multiply, not a VPU divide chain.
    context = ctx * pl.reciprocal(denom, approx=True)   # (B, H)

    # ---- MLP head: fc1 -> relu -> fc2 (bf16 MXU operands, f32 accumulation) ----
    h1 = (
        jnp.dot(context.astype(w1_ref.dtype), w1_ref[...],
                preferred_element_type=jnp.float32)
        + b1_ref[...]
    )
    h1 = jnp.maximum(h1, 0.0)
    out = (
        jnp.dot(h1.astype(w2_ref.dtype), w2_ref[...],
                preferred_element_type=jnp.float32)
        + b2_ref[...]
    )
    out_ref[...] = out.astype(out_ref.dtype)


def _pad_to(a, shape):
    return jnp.pad(a, [(0, s - d) for d, s in zip(a.shape, shape)])


def rnn_classifier_with_attention(x, params):
    """x: (B, T, D) batch-first, like the PyTorch module."""
    B, T, D = x.shape
    H = params["w_hh"].shape[0]
    F1 = params["w1"].shape[0]
    O = params["w2"].shape[0]

    # Minimal padding (perf review): batch -> 8 sublanes, D -> 32, output lane dim
    # -> 128 for an unmasked lane-dense store.  H (=64) and F1 (=32) are passed
    # unpadded; Mosaic masks them internally.  Zero padding keeps the math exact:
    # padded D columns contribute 0, padded output columns stay 0 and are sliced off.
    Bp = max(8, ((B + 7) // 8) * 8)
    Dp = ((D + 31) // 32) * 32
    Op = ((O + 127) // 128) * 128

    f32, bf16 = jnp.float32, jnp.bfloat16

    # Transpose fuses into the (required) zero-pad copy; flatten to (T*Bp, Dp) so the
    # kernel needs no reshape.
    x_tm = _pad_to(jnp.transpose(x, (1, 0, 2)).astype(bf16), (T, Bp, Dp))
    x_2d = x_tm.reshape(T * Bp, Dp)

    # b_att is dropped entirely: softmax is shift-invariant, so it never affects out.
    args = (
        x_2d,
        _pad_to(params["w_ih"].T.astype(bf16), (Dp, H)),
        params["w_hh"].T.astype(bf16),
        (params["b_ih"] + params["b_hh"]).reshape(1, H).astype(f32),
        params["w_att"].reshape(1, H).astype(f32),
        params["w1"].T.astype(bf16),
        params["b1"].reshape(1, F1).astype(f32),
        _pad_to(params["w2"].T.astype(bf16), (F1, Op)),
        _pad_to(params["b2"].reshape(1, O).astype(f32), (1, Op)),
    )

    flops = 2 * (T * Bp * Dp * H            # hoisted input projection
                 + (T - 1) * Bp * H * H     # recurrence (t=0 matmul skipped)
                 + Bp * H * F1              # fc1
                 + Bp * F1 * Op)            # fc2
    transcendentals = T * Bp * H + 3 * T * Bp        # tanh + online-softmax exps
    bytes_accessed = (sum(a.size * a.dtype.itemsize for a in args)
                      + Bp * Op * 4)

    vmem = pl.BlockSpec(memory_space=pltpu.MemorySpace.VMEM)
    out_padded = pl.pallas_call(
        rnn_attn_kernel,
        out_shape=jax.ShapeDtypeStruct((Bp, Op), f32),
        in_specs=[vmem] * len(args),
        out_specs=vmem,
        cost_estimate=pl.CostEstimate(
            flops=flops,
            transcendentals=transcendentals,
            bytes_accessed=bytes_accessed,
        ),
    )(*args)
    return out_padded[:B, :O]


def _reference(x, p):
    """Pure-JAX f32 reference mirroring the PyTorch forward (incl. b_att)."""
    B, T, D = x.shape
    H = p["w_hh"].shape[0]
    h = jnp.zeros((B, H), jnp.float32)
    outs = []
    for t in range(T):
        h = jnp.tanh(x[:, t, :] @ p["w_ih"].T + p["b_ih"]
                     + h @ p["w_hh"].T + p["b_hh"])
        outs.append(h)
    rnn_out = jnp.stack(outs, axis=1)                    # (B, T, H)
    scores = rnn_out @ p["w_att"].T + p["b_att"]         # (B, T, 1)
    w = jax.nn.softmax(scores, axis=1)
    ctx = jnp.sum(w * rnn_out, axis=1)                   # (B, H)
    h1 = jnp.maximum(ctx @ p["w1"].T + p["b1"], 0.0)
    return h1 @ p["w2"].T + p["b2"]


if __name__ == "__main__":
    # Module defaults: input_dim=25, hidden_dim=64, output_dim=4
    B, T, D, H, O = 2, 8, 25, 64, 4
    key = jax.random.PRNGKey(0)
    ks = jax.random.split(key, 12)

    def init(k, shape, fan_in):
        bound = 1.0 / jnp.sqrt(fan_in)
        return jax.random.uniform(k, shape, jnp.float32, -bound, bound)

    params = {
        "w_ih": init(ks[0], (H, D), D),      # nn.RNN weight_ih_l0
        "w_hh": init(ks[1], (H, H), H),      # nn.RNN weight_hh_l0
        "b_ih": init(ks[2], (H,), H),
        "b_hh": init(ks[3], (H,), H),
        "w_att": init(ks[4], (1, H), H),     # Attention: Linear(H, 1)
        "b_att": init(ks[5], (1,), H),       # used by the reference; a softmax no-op
        "w1": init(ks[6], (32, H), H),       # fc1: Linear(H, 32)
        "b1": init(ks[7], (32,), H),
        "w2": init(ks[8], (O, 32), 32),      # fc2: Linear(32, O)
        "b2": init(ks[9], (O,), 32),
    }

    x = jax.random.normal(ks[10], (B, T, D), jnp.float32)

    apply_fn = jax.jit(rnn_classifier_with_attention)
    out = jax.block_until_ready(apply_fn(x, params))

    ref = _reference(x, params)
    assert out.shape == (B, O)
    # bf16 MXU operands through the 8-step recurrence -> loosened tolerance
    # (per the performance review; f32 path previously matched at 2e-4).
    assert jnp.allclose(out, ref, atol=5e-2, rtol=5e-2), (out, ref)

    print("KERNEL_OK")
</pallas_src>

<mosaic_0001>
module attributes {stable_mosaic.version = 11 : i64} {
  func.func @rnn_attn_kernel(%arg0: memref<64x32xbf16, #tpu.memory_space<vmem>>, %arg1: memref<32x64xbf16, #tpu.memory_space<vmem>>, %arg2: memref<64x64xbf16, #tpu.memory_space<vmem>>, %arg3: memref<1x64xf32, #tpu.memory_space<vmem>>, %arg4: memref<1x64xf32, #tpu.memory_space<vmem>>, %arg5: memref<64x32xbf16, #tpu.memory_space<vmem>>, %arg6: memref<1x32xf32, #tpu.memory_space<vmem>>, %arg7: memref<32x128xbf16, #tpu.memory_space<vmem>>, %arg8: memref<1x128xf32, #tpu.memory_space<vmem>>, %arg9: memref<8x128xf32, #tpu.memory_space<vmem>>) attributes {dimension_semantics = [], scalar_prefetch = 0 : i64, scratch_operands = 0 : i64, tpu.core_type = #tpu.core_type<tc>} {
    %c0 = arith.constant 0 : index
    %c0_0 = arith.constant 0 : index
    %0 = vector.load %arg0[%c0, %c0_0] : memref<64x32xbf16, #tpu.memory_space<vmem>>, vector<64x32xbf16>
    %c0_1 = arith.constant 0 : index
    %c0_2 = arith.constant 0 : index
    %1 = vector.load %arg1[%c0_1, %c0_2] : memref<32x64xbf16, #tpu.memory_space<vmem>>, vector<32x64xbf16>
    %cst = arith.constant dense<0.000000e+00> : vector<64x64xf32>
    %2 = tpu.matmul %0, %1, %cst {dimension_numbers = #tpu.dot_dimension_numbers<[1], [0], [0], [1], [0, 0, 1, 1], [], []>} : vector<64x32xbf16>, vector<32x64xbf16>, vector<64x64xf32> -> vector<64x64xf32>
    %c0_3 = arith.constant 0 : index
    %c0_4 = arith.constant 0 : index
    %3 = vector.load %arg3[%c0_3, %c0_4] : memref<1x64xf32, #tpu.memory_space<vmem>>, vector<1x64xf32>
    %4 = vector.broadcast %3 : vector<1x64xf32> to vector<64x64xf32>
    %5 = arith.addf %2, %4 : vector<64x64xf32>
    %c0_5 = arith.constant 0 : index
    %c0_6 = arith.constant 0 : index
    %6 = vector.load %arg2[%c0_5, %c0_6] : memref<64x64xbf16, #tpu.memory_space<vmem>>, vector<64x64xbf16>
    %c0_7 = arith.constant 0 : index
    %c0_8 = arith.constant 0 : index
    %7 = vector.load %arg4[%c0_7, %c0_8] : memref<1x64xf32, #tpu.memory_space<vmem>>, vector<1x64xf32>
    %8 = vector.extract_strided_slice %5 {offsets = [0, 0], sizes = [8, 64], strides = [1, 1]} : vector<64x64xf32> to vector<8x64xf32>
    %9 = math.tanh %8 : vector<8x64xf32>
    %10 = vector.broadcast %7 : vector<1x64xf32> to vector<8x64xf32>
    %11 = arith.mulf %9, %10 : vector<8x64xf32>
    %cst_9 = arith.constant dense<0.000000e+00> : vector<8xf32>
    %12 = vector.multi_reduction <add>, %11, %cst_9 [1] : vector<8x64xf32> to vector<8xf32>
    %13 = vector.shape_cast %12 : vector<8xf32> to vector<8x1xf32>
    %cst_10 = arith.constant 1.000000e+00 : f32
    %14 = vector.broadcast %cst_10 : f32 to vector<8x1xf32>
    %15 = vector.extract_strided_slice %5 {offsets = [8, 0], sizes = [8, 64], strides = [1, 1]} : vector<64x64xf32> to vector<8x64xf32>
    %16 = arith.truncf %9 : vector<8x64xf32> to vector<8x64xbf16>
    %cst_11 = arith.constant dense<0.000000e+00> : vector<8x64xf32>
    %17 = tpu.matmul %16, %6, %cst_11 {dimension_numbers = #tpu.dot_dimension_numbers<[1], [0], [0], [1], [0, 0, 1, 1], [], []>} : vector<8x64xbf16>, vector<64x64xbf16>, vector<8x64xf32> -> vector<8x64xf32>
    %18 = arith.addf %15, %17 : vector<8x64xf32>
    %19 = math.tanh %18 : vector<8x64xf32>
    %20 = vector.broadcast %7 : vector<1x64xf32> to vector<8x64xf32>
    %21 = arith.mulf %19, %20 : vector<8x64xf32>
    %cst_12 = arith.constant dense<0.000000e+00> : vector<8xf32>
    %22 = vector.multi_reduction <add>, %21, %cst_12 [1] : vector<8x64xf32> to vector<8xf32>
    %23 = vector.shape_cast %22 : vector<8xf32> to vector<8x1xf32>
    %24 = arith.maximumf %13, %23 : vector<8x1xf32>
    %25 = arith.subf %13, %24 : vector<8x1xf32>
    %26 = math.exp %25 : vector<8x1xf32>
    %27 = arith.subf %23, %24 : vector<8x1xf32>
    %28 = math.exp %27 : vector<8x1xf32>
    %29 = arith.mulf %26, %14 : vector<8x1xf32>
    %30 = arith.addf %29, %28 : vector<8x1xf32>
    %31 = vector.broadcast %26 : vector<8x1xf32> to vector<8x64xf32>
    %32 = arith.mulf %31, %9 : vector<8x64xf32>
    %33 = vector.broadcast %28 : vector<8x1xf32> to vector<8x64xf32>
    %34 = arith.mulf %33, %19 : vector<8x64xf32>
    %35 = arith.addf %32, %34 : vector<8x64xf32>
    %36 = vector.extract_strided_slice %5 {offsets = [16, 0], sizes = [8, 64], strides = [1, 1]} : vector<64x64xf32> to vector<8x64xf32>
    %37 = arith.truncf %19 : vector<8x64xf32> to vector<8x64xbf16>
    %cst_13 = arith.constant dense<0.000000e+00> : vector<8x64xf32>
    %38 = tpu.matmul %37, %6, %cst_13 {dimension_numbers = #tpu.dot_dimension_numbers<[1], [0], [0], [1], [0, 0, 1, 1], [], []>} : vector<8x64xbf16>, vector<64x64xbf16>, vector<8x64xf32> -> vector<8x64xf32>
    %39 = arith.addf %36, %38 : vector<8x64xf32>
    %40 = math.tanh %39 : vector<8x64xf32>
    %41 = vector.broadcast %7 : vector<1x64xf32> to vector<8x64xf32>
    %42 = arith.mulf %40, %41 : vector<8x64xf32>
    %cst_14 = arith.constant dense<0.000000e+00> : vector<8xf32>
    %43 = vector.multi_reduction <add>, %42, %cst_14 [1] : vector<8x64xf32> to vector<8xf32>
    %44 = vector.shape_cast %43 : vector<8xf32> to vector<8x1xf32>
    %45 = arith.maximumf %24, %44 : vector<8x1xf32>
    %46 = arith.subf %24, %45 : vector<8x1xf32>
    %47 = math.exp %46 : vector<8x1xf32>
    %48 = arith.subf %44, %45 : vector<8x1xf32>
    %49 = math.exp %48 : vector<8x1xf32>
    %50 = arith.mulf %47, %30 : vector<8x1xf32>
    %51 = arith.addf %50, %49 : vector<8x1xf32>
    %52 = vector.broadcast %47 : vector<8x1xf32> to vector<8x64xf32>
    %53 = arith.mulf %52, %35 : vector<8x64xf32>
    %54 = vector.broadcast %49 : vector<8x1xf32> to vector<8x64xf32>
    %55 = arith.mulf %54, %40 : vector<8x64xf32>
    %56 = arith.addf %53, %55 : vector<8x64xf32>
    %57 = vector.extract_strided_slice %5 {offsets = [24, 0], sizes = [8, 64], strides = [1, 1]} : vector<64x64xf32> to vector<8x64xf32>
    %58 = arith.truncf %40 : vector<8x64xf32> to vector<8x64xbf16>
    %cst_15 = arith.constant dense<0.000000e+00> : vector<8x64xf32>
    %59 = tpu.matmul %58, %6, %cst_15 {dimension_numbers = #tpu.dot_dimension_numbers<[1], [0], [0], [1], [0, 0, 1, 1], [], []>} : vector<8x64xbf16>, vector<64x64xbf16>, vector<8x64xf32> -> vector<8x64xf32>
    %60 = arith.addf %57, %59 : vector<8x64xf32>
    %61 = math.tanh %60 : vector<8x64xf32>
    %62 = vector.broadcast %7 : vector<1x64xf32> to vector<8x64xf32>
    %63 = arith.mulf %61, %62 : vector<8x64xf32>
    %cst_16 = arith.constant dense<0.000000e+00> : vector<8xf32>
    %64 = vector.multi_reduction <add>, %63, %cst_16 [1] : vector<8x64xf32> to vector<8xf32>
    %65 = vector.shape_cast %64 : vector<8xf32> to vector<8x1xf32>
    %66 = arith.maximumf %45, %65 : vector<8x1xf32>
    %67 = arith.subf %45, %66 : vector<8x1xf32>
    %68 = math.exp %67 : vector<8x1xf32>
    %69 = arith.subf %65, %66 : vector<8x1xf32>
    %70 = math.exp %69 : vector<8x1xf32>
    %71 = arith.mulf %68, %51 : vector<8x1xf32>
    %72 = arith.addf %71, %70 : vector<8x1xf32>
    %73 = vector.broadcast %68 : vector<8x1xf32> to vector<8x64xf32>
    %74 = arith.mulf %73, %56 : vector<8x64xf32>
    %75 = vector.broadcast %70 : vector<8x1xf32> to vector<8x64xf32>
    %76 = arith.mulf %75, %61 : vector<8x64xf32>
    %77 = arith.addf %74, %76 : vector<8x64xf32>
    %78 = vector.extract_strided_slice %5 {offsets = [32, 0], sizes = [8, 64], strides = [1, 1]} : vector<64x64xf32> to vector<8x64xf32>
    %79 = arith.truncf %61 : vector<8x64xf32> to vector<8x64xbf16>
    %cst_17 = arith.constant dense<0.000000e+00> : vector<8x64xf32>
    %80 = tpu.matmul %79, %6, %cst_17 {dimension_numbers = #tpu.dot_dimension_numbers<[1], [0], [0], [1], [0, 0, 1, 1], [], []>} : vector<8x64xbf16>, vector<64x64xbf16>, vector<8x64xf32> -> vector<8x64xf32>
    %81 = arith.addf %78, %80 : vector<8x64xf32>
    %82 = math.tanh %81 : vector<8x64xf32>
    %83 = vector.broadcast %7 : vector<1x64xf32> to vector<8x64xf32>
    %84 = arith.mulf %82, %83 : vector<8x64xf32>
    %cst_18 = arith.constant dense<0.000000e+00> : vector<8xf32>
    %85 = vector.multi_reduction <add>, %84, %cst_18 [1] : vector<8x64xf32> to vector<8xf32>
    %86 = vector.shape_cast %85 : vector<8xf32> to vector<8x1xf32>
    %87 = arith.maximumf %66, %86 : vector<8x1xf32>
    %88 = arith.subf %66, %87 : vector<8x1xf32>
    %89 = math.exp %88 : vector<8x1xf32>
    %90 = arith.subf %86, %87 : vector<8x1xf32>
    %91 = math.exp %90 : vector<8x1xf32>
    %92 = arith.mulf %89, %72 : vector<8x1xf32>
    %93 = arith.addf %92, %91 : vector<8x1xf32>
    %94 = vector.broadcast %89 : vector<8x1xf32> to vector<8x64xf32>
    %95 = arith.mulf %94, %77 : vector<8x64xf32>
    %96 = vector.broadcast %91 : vector<8x1xf32> to vector<8x64xf32>
    %97 = arith.mulf %96, %82 : vector<8x64xf32>
    %98 = arith.addf %95, %97 : vector<8x64xf32>
    %99 = vector.extract_strided_slice %5 {offsets = [40, 0], sizes = [8, 64], strides = [1, 1]} : vector<64x64xf32> to vector<8x64xf32>
    %100 = arith.truncf %82 : vector<8x64xf32> to vector<8x64xbf16>
    %cst_19 = arith.constant dense<0.000000e+00> : vector<8x64xf32>
    %101 = tpu.matmul %100, %6, %cst_19 {dimension_numbers = #tpu.dot_dimension_numbers<[1], [0], [0], [1], [0, 0, 1, 1], [], []>} : vector<8x64xbf16>, vector<64x64xbf16>, vector<8x64xf32> -> vector<8x64xf32>
    %102 = arith.addf %99, %101 : vector<8x64xf32>
    %103 = math.tanh %102 : vector<8x64xf32>
    %104 = vector.broadcast %7 : vector<1x64xf32> to vector<8x64xf32>
    %105 = arith.mulf %103, %104 : vector<8x64xf32>
    %cst_20 = arith.constant dense<0.000000e+00> : vector<8xf32>
    %106 = vector.multi_reduction <add>, %105, %cst_20 [1] : vector<8x64xf32> to vector<8xf32>
    %107 = vector.shape_cast %106 : vector<8xf32> to vector<8x1xf32>
    %108 = arith.maximumf %87, %107 : vector<8x1xf32>
    %109 = arith.subf %87, %108 : vector<8x1xf32>
    %110 = math.exp %109 : vector<8x1xf32>
    %111 = arith.subf %107, %108 : vector<8x1xf32>
    %112 = math.exp %111 : vector<8x1xf32>
    %113 = arith.mulf %110, %93 : vector<8x1xf32>
    %114 = arith.addf %113, %112 : vector<8x1xf32>
    %115 = vector.broadcast %110 : vector<8x1xf32> to vector<8x64xf32>
    %116 = arith.mulf %115, %98 : vector<8x64xf32>
    %117 = vector.broadcast %112 : vector<8x1xf32> to vector<8x64xf32>
    %118 = arith.mulf %117, %103 : vector<8x64xf32>
    %119 = arith.addf %116, %118 : vector<8x64xf32>
    %120 = vector.extract_strided_slice %5 {offsets = [48, 0], sizes = [8, 64], strides = [1, 1]} : vector<64x64xf32> to vector<8x64xf32>
    %121 = arith.truncf %103 : vector<8x64xf32> to vector<8x64xbf16>
    %cst_21 = arith.constant dense<0.000000e+00> : vector<8x64xf32>
    %122 = tpu.matmul %121, %6, %cst_21 {dimension_numbers = #tpu.dot_dimension_numbers<[1], [0], [0], [1], [0, 0, 1, 1], [], []>} : vector<8x64xbf16>, vector<64x64xbf16>, vector<8x64xf32> -> vector<8x64xf32>
    %123 = arith.addf %120, %122 : vector<8x64xf32>
    %124 = math.tanh %123 : vector<8x64xf32>
    %125 = vector.broadcast %7 : vector<1x64xf32> to vector<8x64xf32>
    %126 = arith.mulf %124, %125 : vector<8x64xf32>
    %cst_22 = arith.constant dense<0.000000e+00> : vector<8xf32>
    %127 = vector.multi_reduction <add>, %126, %cst_22 [1] : vector<8x64xf32> to vector<8xf32>
    %128 = vector.shape_cast %127 : vector<8xf32> to vector<8x1xf32>
    %129 = arith.maximumf %108, %128 : vector<8x1xf32>
    %130 = arith.subf %108, %129 : vector<8x1xf32>
    %131 = math.exp %130 : vector<8x1xf32>
    %132 = arith.subf %128, %129 : vector<8x1xf32>
    %133 = math.exp %132 : vector<8x1xf32>
    %134 = arith.mulf %131, %114 : vector<8x1xf32>
    %135 = arith.addf %134, %133 : vector<8x1xf32>
    %136 = vector.broadcast %131 : vector<8x1xf32> to vector<8x64xf32>
    %137 = arith.mulf %136, %119 : vector<8x64xf32>
    %138 = vector.broadcast %133 : vector<8x1xf32> to vector<8x64xf32>
    %139 = arith.mulf %138, %124 : vector<8x64xf32>
    %140 = arith.addf %137, %139 : vector<8x64xf32>
    %141 = vector.extract_strided_slice %5 {offsets = [56, 0], sizes = [8, 64], strides = [1, 1]} : vector<64x64xf32> to vector<8x64xf32>
    %142 = arith.truncf %124 : vector<8x64xf32> to vector<8x64xbf16>
    %cst_23 = arith.constant dense<0.000000e+00> : vector<8x64xf32>
    %143 = tpu.matmul %142, %6, %cst_23 {dimension_numbers = #tpu.dot_dimension_numbers<[1], [0], [0], [1], [0, 0, 1, 1], [], []>} : vector<8x64xbf16>, vector<64x64xbf16>, vector<8x64xf32> -> vector<8x64xf32>
    %144 = arith.addf %141, %143 : vector<8x64xf32>
    %145 = math.tanh %144 : vector<8x64xf32>
    %146 = vector.broadcast %7 : vector<1x64xf32> to vector<8x64xf32>
    %147 = arith.mulf %145, %146 : vector<8x64xf32>
    %cst_24 = arith.constant dense<0.000000e+00> : vector<8xf32>
    %148 = vector.multi_reduction <add>, %147, %cst_24 [1] : vector<8x64xf32> to vector<8xf32>
    %149 = vector.shape_cast %148 : vector<8xf32> to vector<8x1xf32>
    %150 = arith.maximumf %129, %149 : vector<8x1xf32>
    %151 = arith.subf %129, %150 : vector<8x1xf32>
    %152 = math.exp %151 : vector<8x1xf32>
    %153 = arith.subf %149, %150 : vector<8x1xf32>
    %154 = math.exp %153 : vector<8x1xf32>
    %155 = arith.mulf %152, %135 : vector<8x1xf32>
    %156 = arith.addf %155, %154 : vector<8x1xf32>
    %157 = vector.broadcast %152 : vector<8x1xf32> to vector<8x64xf32>
    %158 = arith.mulf %157, %140 : vector<8x64xf32>
    %159 = vector.broadcast %154 : vector<8x1xf32> to vector<8x64xf32>
    %160 = arith.mulf %159, %145 : vector<8x64xf32>
    %161 = arith.addf %158, %160 : vector<8x64xf32>
    %162 = tpu.reciprocal %156 {approx = true} : vector<8x1xf32> -> vector<8x1xf32>
    %163 = vector.broadcast %162 : vector<8x1xf32> to vector<8x64xf32>
    %164 = arith.mulf %161, %163 : vector<8x64xf32>
    %165 = arith.truncf %164 : vector<8x64xf32> to vector<8x64xbf16>
    %c0_25 = arith.constant 0 : index
    %c0_26 = arith.constant 0 : index
    %166 = vector.load %arg5[%c0_25, %c0_26] : memref<64x32xbf16, #tpu.memory_space<vmem>>, vector<64x32xbf16>
    %cst_27 = arith.constant dense<0.000000e+00> : vector<8x32xf32>
    %167 = tpu.matmul %165, %166, %cst_27 {dimension_numbers = #tpu.dot_dimension_numbers<[1], [0], [0], [1], [0, 0, 1, 1], [], []>} : vector<8x64xbf16>, vector<64x32xbf16>, vector<8x32xf32> -> vector<8x32xf32>
    %c0_28 = arith.constant 0 : index
    %c0_29 = arith.constant 0 : index
    %168 = vector.load %arg6[%c0_28, %c0_29] : memref<1x32xf32, #tpu.memory_space<vmem>>, vector<1x32xf32>
    %169 = vector.broadcast %168 : vector<1x32xf32> to vector<8x32xf32>
    %170 = arith.addf %167, %169 : vector<8x32xf32>
    %cst_30 = arith.constant 0.000000e+00 : f32
    %171 = vector.broadcast %cst_30 : f32 to vector<8x32xf32>
    %172 = arith.maximumf %170, %171 : vector<8x32xf32>
    %173 = arith.truncf %172 : vector<8x32xf32> to vector<8x32xbf16>
    %c0_31 = arith.constant 0 : index
    %c0_32 = arith.constant 0 : index
    %174 = vector.load %arg7[%c0_31, %c0_32] : memref<32x128xbf16, #tpu.memory_space<vmem>>, vector<32x128xbf16>
    %cst_33 = arith.constant dense<0.000000e+00> : vector<8x128xf32>
    %175 = tpu.matmul %173, %174, %cst_33 {dimension_numbers = #tpu.dot_dimension_numbers<[1], [0], [0], [1], [0, 0, 1, 1], [], []>} : vector<8x32xbf16>, vector<32x128xbf16>, vector<8x128xf32> -> vector<8x128xf32>
    %c0_34 = arith.constant 0 : index
    %c0_35 = arith.constant 0 : index
    %176 = vector.load %arg8[%c0_34, %c0_35] : memref<1x128xf32, #tpu.memory_space<vmem>>, vector<1x128xf32>
    %177 = vector.broadcast %176 : vector<1x128xf32> to vector<8x128xf32>
    %178 = arith.addf %175, %177 : vector<8x128xf32>
    %c0_36 = arith.constant 0 : index
    %c0_37 = arith.constant 0 : index
    %179 = vector.load %arg9[%c0_36, %c0_37] : memref<8x128xf32, #tpu.memory_space<vmem>>, vector<8x128xf32>
    tpu.vector_store %arg9[%c0_36, %c0_37], %178 {strides = array<i32>} : memref<8x128xf32, #tpu.memory_space<vmem>>, vector<8x128xf32>,
    return
  }
}

</mosaic_0001>

<llo_original>
// kernel: rnn_classifier_with_attention.1
$region0: #{rnn_classifier_with_attention.1}
  #allocation0 [shape = 'u32[]', space=smem, size = 0x4, offset = 0x4, fixed_abs, tag = 'smem constant byte address 0x4 - core index']
  #allocation1 [shape = 'u32[72,128]{1,0:T(1,128)}', space=vmem, size = 0x9000, scoped, tag = 'internal scratch']
  %s0 = inlined_call_operand.vmem [shape: bf16[64,32], index: 0, kind: input, shape index: {}]
  %s1 = inlined_call_operand.vmem [shape: bf16[32,64], index: 1, kind: input, shape index: {}]
  %s2 = inlined_call_operand.vmem [shape: bf16[64,64], index: 2, kind: input, shape index: {}]
  %s3 = inlined_call_operand.vmem [shape: f32[1,64], index: 3, kind: input, shape index: {}]
  %s4 = inlined_call_operand.vmem [shape: f32[1,64], index: 4, kind: input, shape index: {}]
  %s5 = inlined_call_operand.vmem [shape: bf16[64,32], index: 5, kind: input, shape index: {}]
  %s6 = inlined_call_operand.vmem [shape: f32[1,32], index: 6, kind: input, shape index: {}]
  %s7 = inlined_call_operand.vmem [shape: bf16[32,128], index: 7, kind: input, shape index: {}]
  %s8 = inlined_call_operand.vmem [shape: f32[1,128], index: 8, kind: input, shape index: {}]
  %s9 = inlined_call_operand.vmem [shape: f32[8,128], index: 9, kind: output, shape index: {}]
  %s10 = sld [smem:[#allocation0]]
  $region46: #{rnn_classifier_with_attention.1} parent=0
    _
  %s12 = ssub.s32 1, %s10
  %s13 = scalar_select 0, %s12, %s10
  // Predicated region
  $region2: #{rnn_classifier_with_attention.1} parent=0 // pred_check
    _
  $region3: #{rnn_classifier_with_attention.1} parent=0 // pred_check_branch
    %15 = sbr.rel (0) target = $region5
  $region4: #{rnn_classifier_with_attention.1} parent=0 // pred_region
    _
  $region5: #{rnn_classifier_with_attention.1} parent=0 // pred_fallthru
    _
  // Predicated region
  $region6: #{rnn_classifier_with_attention.1} parent=0 // pred_check
    _
  $region7: #{rnn_classifier_with_attention.1} parent=0 // pred_check_branch
    %17 = sbr.rel (0) target = $region9
  $region8: #{rnn_classifier_with_attention.1} parent=0 // pred_region
    _
  $region9: #{rnn_classifier_with_attention.1} parent=0 // pred_fallthru
    _
  // Predicated region
  $region10: #{rnn_classifier_with_attention.1} parent=0 // pred_check
    _
  $region11: #{rnn_classifier_with_attention.1} parent=0 // pred_check_branch
    %19 = sbr.rel (0) target = $region13
  $region12: #{rnn_classifier_with_attention.1} parent=0 // pred_region
    _
  $region13: #{rnn_classifier_with_attention.1} parent=0 // pred_fallthru
    _
  // Predicated region
  $region14: #{rnn_classifier_with_attention.1} parent=0 // pred_check
    _
  $region15: #{rnn_classifier_with_attention.1} parent=0 // pred_check_branch
    %21 = sbr.rel (0) target = $region17
  $region16: #{rnn_classifier_with_attention.1} parent=0 // pred_region
    _
  $region17: #{rnn_classifier_with_attention.1} parent=0 // pred_fallthru
    _
  // Predicated region
  $region18: #{rnn_classifier_with_attention.1} parent=0 // pred_check
    _
  $region19: #{rnn_classifier_with_attention.1} parent=0 // pred_check_branch
    %23 = sbr.rel (0) target = $region21
  $region20: #{rnn_classifier_with_attention.1} parent=0 // pred_region
    _
  $region21: #{rnn_classifier_with_attention.1} parent=0 // pred_fallthru
    _
  // Predicated region
  $region22: #{rnn_classifier_with_attention.1} parent=0 // pred_check
    _
  $region23: #{rnn_classifier_with_attention.1} parent=0 // pred_check_branch
    %25 = sbr.rel (0) target = $region25
  $region24: #{rnn_classifier_with_attention.1} parent=0 // pred_region
    _
  $region25: #{rnn_classifier_with_attention.1} parent=0 // pred_fallthru
    _
  // Predicated region
  $region26: #{rnn_classifier_with_attention.1} parent=0 // pred_check
    _
  $region27: #{rnn_classifier_with_attention.1} parent=0 // pred_check_branch
    %27 = sbr.rel (0) target = $region29
  $region28: #{rnn_classifier_with_attention.1} parent=0 // pred_region
    _
  $region29: #{rnn_classifier_with_attention.1} parent=0 // pred_fallthru
    _
  // Predicated region
  $region30: #{rnn_classifier_with_attention.1} parent=0 // pred_check
    _
  $region31: #{rnn_classifier_with_attention.1} parent=0 // pred_check_branch
    %29 = sbr.rel (0) target = $region33
  $region32: #{rnn_classifier_with_attention.1} parent=0 // pred_region
    _
  $region33: #{rnn_classifier_with_attention.1} parent=0 // pred_fallthru
    _
  // Predicated region
  $region34: #{rnn_classifier_with_attention.1} parent=0 // pred_check
    _
  $region35: #{rnn_classifier_with_attention.1} parent=0 // pred_check_branch
    %31 = sbr.rel (0) target = $region37
  $region36: #{rnn_classifier_with_attention.1} parent=0 // pred_region
    _
  $region37: #{rnn_classifier_with_attention.1} parent=0 // pred_fallthru
    _
  %v33 = vld [vmem:[%s0] sm:$0xf]
  %v34 = vld [vmem:[%s0 + $0x4] sm:$0xf]
  %v35 = vld [vmem:[%s0 + $0x8] sm:$0xf]
  %v36 = vld [vmem:[%s0 + $0xc] sm:$0xf]
  %v37 = vld [vmem:[%s0 + $0x10] sm:$0xf]
  %v38 = vld [vmem:[%s0 + $0x14] sm:$0xf]
  %v39 = vld [vmem:[%s0 + $0x18] sm:$0xf]
  %v40 = vld [vmem:[%s0 + $0x1c] sm:$0xf]
  %v41 = vld [vmem:[%s1] sm:$0xf]
  %v42 = vld [vmem:[%s1 + $0x4] sm:$0xf]
  %v43 = vld [vmem:[%s1 + $0x8] sm:$0xf]
  %v44 = vld [vmem:[%s1 + $0xc] sm:$0xf]
  %v45 = vld [vmem:[%s3] sm:$0x1]
  %v47 = vperm.slane %v45, 0
  %v57 = vunpack.c.l.b16 %v33
  %v58 = vunpack.c.l.b16 %v34
  %v59 = vunpack.c.l.b16 %v35
  %v60 = vunpack.c.l.b16 %v36
  %v61 = vunpack.c.l.b16 %v37
  %v62 = vunpack.c.l.b16 %v38
  %v63 = vunpack.c.l.b16 %v39
  %v64 = vunpack.c.l.b16 %v40
  %v65 = vpack.c.b16 %v58, %v57
  %v66 = vpack.c.b16 %v60, %v59
  %v67 = vpack.c.b16 %v62, %v61
  %v68 = vpack.c.b16 %v64, %v63
  %v73 = vunpack.c.l.b16 %v41
  %v74 = vunpack.c.l.b16 %v42
  %v75 = vunpack.c.l.b16 %v43
  %v76 = vunpack.c.l.b16 %v44
  %v77 = vpack.c.b16 %v74, %v73
  %v78 = vpack.c.b16 %v76, %v75
  %vm81 = vcmask 261120
  %v83 = vsel %vm81, %v65, 0
  %v86 = vsel %vm81, %v66, 0
  %v89 = vsel %vm81, %v67, 0
  %v92 = vsel %vm81, %v68, 0
  %94 = vmatpush.bf16.msra.mxu0 0
  %95 = vmatpush.bf16.msra.mxu0 0
  %96 = vmatpush.bf16.msra.mxu0 0
  %97 = vmatpush.bf16.msra.mxu0 0
  %98 = vmatpush.bf16.msra.mxu0 0
  %99 = vmatpush.bf16.msra.mxu0 0
  %100 = vmatpush.bf16.msra.mxu0 %v78
  %101 = vmatpush.bf16.msra.mxu0 %v77
  %102 = vmatmul.bf16.gmra.mxu0 %v83
  %v103 = vpop.f32.mrf.mxu0
  %v104 = vadd.f32 %v47, %v103
  %v105 = vpop.f32.mrf.mxu0
  %v106 = vadd.f32 %v47, %v105
  %107 = vmatmul.bf16.gmra.mxu0 %v86
  %v108 = vpop.f32.mrf.mxu0
  %v109 = vadd.f32 %v47, %v108
  %v110 = vpop.f32.mrf.mxu0
  %v111 = vadd.f32 %v47, %v110
  %112 = vmatmul.bf16.gmra.mxu0 %v89
  %v113 = vpop.f32.mrf.mxu0
  %v114 = vadd.f32 %v47, %v113
  %v115 = vpop.f32.mrf.mxu0
  %v116 = vadd.f32 %v47, %v115
  %117 = vmatmul.bf16.gmra.mxu0 %v92
  %v118 = vpop.f32.mrf.mxu0
  %v119 = vadd.f32 %v47, %v118
  %v120 = vpop.f32.mrf.mxu0
  %v121 = vadd.f32 %v47, %v120
  %122 = vdwg.mxu0
  %v123 = vld [vmem:[%s2] sm:$0xf]
  %v124 = vld [vmem:[%s2 + $0x4] sm:$0xf]
  %v125 = vld [vmem:[%s2 + $0x8] sm:$0xf]
  %v126 = vld [vmem:[%s2 + $0xc] sm:$0xf]
  %v127 = vld [vmem:[%s2 + $0x10] sm:$0xf]
  %v128 = vld [vmem:[%s2 + $0x14] sm:$0xf]
  %v129 = vld [vmem:[%s2 + $0x18] sm:$0xf]
  %v130 = vld [vmem:[%s2 + $0x1c] sm:$0xf]
  %v131 = vld [vmem:[%s4] sm:$0x1]
  %v132 = vtanh.pop %v104
  %v134 = vperm.slane %v131, 0
  %v136 = vmul.f32 %v132, %v134
  %vm137 = vcmask 523264
  %v138 = vsel %vm137, %v136, 0.0
  %139 = vadd.xlane.f32.xlu0 %v138
  %v140 = vpop.xlane.xlu0 %139
  %v141 = vpack.c.bf16 %v132, %v132
  %v150 = vunpack.c.l.b16 %v123
  %v151 = vunpack.c.l.b16 %v124
  %v152 = vunpack.c.l.b16 %v125
  %v153 = vunpack.c.l.b16 %v126
  %v154 = vunpack.c.l.b16 %v127
  %v155 = vunpack.c.l.b16 %v128
  %v156 = vunpack.c.l.b16 %v129
  %v157 = vunpack.c.l.b16 %v130
  %v158 = vpack.c.b16 %v151, %v150
  %v159 = vpack.c.b16 %v153, %v152
  %v160 = vpack.c.b16 %v155, %v154
  %v161 = vpack.c.b16 %v157, %v156
  %v167 = vsel %vm137, %v141, 0
  %169 = vmatpush.bf16.msra.mxu0 0
  %170 = vmatpush.bf16.msra.mxu0 0
  %171 = vmatpush.bf16.msra.mxu0 0
  %172 = vmatpush.bf16.msra.mxu0 0
  %173 = vmatpush.bf16.msra.mxu0 %v161
  %174 = vmatpush.bf16.msra.mxu0 %v160
  %175 = vmatpush.bf16.msra.mxu0 %v159
  %176 = vmatpush.bf16.msra.mxu0 %v158
  %177 = vmatmul.bf16.gmra.mxu0 %v167
  %v178 = vpop.f32.mrf.mxu0
  %v179 = vadd.f32 0.0, %v178
  %v180 = vpop.f32.mrf.mxu0
  %181 = vdwg.mxu0
  %v182 = vadd.f32 %v106, %v179
  %v183 = vtanh.pop %v182
  %v184 = vmul.f32 %v183, %v134
  %v185 = vsel %vm137, %v184, 0.0
  %186 = vadd.xlane.f32.xlu0 %v185
  %v187 = vpop.xlane.xlu0 %186
  %v188 = vmax.f32 %v140, %v187
  %v189 = vsub.f32 %v140, %v188
  %v190 = vmul.f32 %v189, 1.442695
  %v191 = vpow.pop %v190
  %v192 = vsub.f32 %v187, %v188
  %v193 = vmul.f32 %v192, 1.442695
  %v194 = vpow.pop %v193
  %v195 = vadd.f32 %v191, %v194
  %v196 = vmul.f32 %v191, %v132
  %v197 = vmul.f32 %v194, %v183
  %v198 = vadd.f32 %v196, %v197
  %v199 = vpack.c.bf16 %v183, %v183
  %v201 = vsel %vm137, %v199, 0
  %203 = vmatpush.bf16.msra.mxu0 0
  %204 = vmatpush.bf16.msra.mxu0 0
  %205 = vmatpush.bf16.msra.mxu0 0
  %206 = vmatpush.bf16.msra.mxu0 0
  %207 = vmatpush.bf16.msra.mxu0 %v161
  %208 = vmatpush.bf16.msra.mxu0 %v160
  %209 = vmatpush.bf16.msra.mxu0 %v159
  %210 = vmatpush.bf16.msra.mxu0 %v158
  %211 = vmatmul.bf16.gmra.mxu0 %v201
  %v212 = vpop.f32.mrf.mxu0
  %v213 = vadd.f32 0.0, %v212
  %v214 = vpop.f32.mrf.mxu0
  %215 = vdwg.mxu0
  %v216 = vadd.f32 %v109, %v213
  %v217 = vtanh.pop %v216
  %v218 = vmul.f32 %v217, %v134
  %v219 = vsel %vm137, %v218, 0.0
  %220 = vadd.xlane.f32.xlu0 %v219
  %v221 = vpop.xlane.xlu0 %220
  %v222 = vmax.f32 %v188, %v221
  %v223 = vsub.f32 %v188, %v222
  %v224 = vmul.f32 %v223, 1.442695
  %v225 = vpow.pop %v224
  %v226 = vsub.f32 %v221, %v222
  %v227 = vmul.f32 %v226, 1.442695
  %v228 = vpow.pop %v227
  %v229 = vmul.f32 %v225, %v195
  %v230 = vadd.f32 %v229, %v228
  %v231 = vmul.f32 %v225, %v198
  %v232 = vmul.f32 %v228, %v217
  %v233 = vadd.f32 %v231, %v232
  %v234 = vpack.c.bf16 %v217, %v217
  %v236 = vsel %vm137, %v234, 0
  %238 = vmatpush.bf16.msra.mxu0 0
  %239 = vmatpush.bf16.msra.mxu0 0
  %240 = vmatpush.bf16.msra.mxu0 0
  %241 = vmatpush.bf16.msra.mxu0 0
  %242 = vmatpush.bf16.msra.mxu0 %v161
  %243 = vmatpush.bf16.msra.mxu0 %v160
  %244 = vmatpush.bf16.msra.mxu0 %v159
  %245 = vmatpush.bf16.msra.mxu0 %v158
  %246 = vmatmul.bf16.gmra.mxu0 %v236
  %v247 = vpop.f32.mrf.mxu0
  %v248 = vadd.f32 0.0, %v247
  %v249 = vpop.f32.mrf.mxu0
  %250 = vdwg.mxu0
  %v251 = vadd.f32 %v111, %v248
  %v252 = vtanh.pop %v251
  %v253 = vmul.f32 %v252, %v134
  %v254 = vsel %vm137, %v253, 0.0
  %255 = vadd.xlane.f32.xlu0 %v254
  %v256 = vpop.xlane.xlu0 %255
  %v257 = vmax.f32 %v222, %v256
  %v258 = vsub.f32 %v222, %v257
  %v259 = vmul.f32 %v258, 1.442695
  %v260 = vpow.pop %v259
  %v261 = vsub.f32 %v256, %v257
  %v262 = vmul.f32 %v261, 1.442695
  %v263 = vpow.pop %v262
  %v264 = vmul.f32 %v260, %v230
  %v265 = vadd.f32 %v264, %v263
  %v266 = vmul.f32 %v260, %v233
  %v267 = vmul.f32 %v263, %v252
  %v268 = vadd.f32 %v266, %v267
  %v269 = vpack.c.bf16 %v252, %v252
  %v271 = vsel %vm137, %v269, 0
  %273 = vmatpush.bf16.msra.mxu0 0
  %274 = vmatpush.bf16.msra.mxu0 0
  %275 = vmatpush.bf16.msra.mxu0 0
  %276 = vmatpush.bf16.msra.mxu0 0
  %277 = vmatpush.bf16.msra.mxu0 %v161
  %278 = vmatpush.bf16.msra.mxu0 %v160
  %279 = vmatpush.bf16.msra.mxu0 %v159
  %280 = vmatpush.bf16.msra.mxu0 %v158
  %281 = vmatmul.bf16.gmra.mxu0 %v271
  %v282 = vpop.f32.mrf.mxu0
  %v283 = vadd.f32 0.0, %v282
  %v284 = vpop.f32.mrf.mxu0
  %285 = vdwg.mxu0
  %v286 = vadd.f32 %v114, %v283
  %v287 = vtanh.pop %v286
  %v288 = vmul.f32 %v287, %v134
  %v289 = vsel %vm137, %v288, 0.0
  %290 = vadd.xlane.f32.xlu0 %v289
  %v291 = vpop.xlane.xlu0 %290
  %v292 = vmax.f32 %v257, %v291
  %v293 = vsub.f32 %v257, %v292
  %v294 = vmul.f32 %v293, 1.442695
  %v295 = vpow.pop %v294
  %v296 = vsub.f32 %v291, %v292
  %v297 = vmul.f32 %v296, 1.442695
  %v298 = vpow.pop %v297
  %v299 = vmul.f32 %v295, %v265
  %v300 = vadd.f32 %v299, %v298
  %v301 = vmul.f32 %v295, %v268
  %v302 = vmul.f32 %v298, %v287
  %v303 = vadd.f32 %v301, %v302
  %v304 = vpack.c.bf16 %v287, %v287
  %v306 = vsel %vm137, %v304, 0
  %308 = vmatpush.bf16.msra.mxu0 0
  %309 = vmatpush.bf16.msra.mxu0 0
  %310 = vmatpush.bf16.msra.mxu0 0
  %311 = vmatpush.bf16.msra.mxu0 0
  %312 = vmatpush.bf16.msra.mxu0 %v161
  %313 = vmatpush.bf16.msra.mxu0 %v160
  %314 = vmatpush.bf16.msra.mxu0 %v159
  %315 = vmatpush.bf16.msra.mxu0 %v158
  %316 = vmatmul.bf16.gmra.mxu0 %v306
  %v317 = vpop.f32.mrf.mxu0
  %v318 = vadd.f32 0.0, %v317
  %v319 = vpop.f32.mrf.mxu0
  %320 = vdwg.mxu0
  %v321 = vadd.f32 %v116, %v318
  %v322 = vtanh.pop %v321
  %v323 = vmul.f32 %v322, %v134
  %v324 = vsel %vm137, %v323, 0.0
  %325 = vadd.xlane.f32.xlu0 %v324
  %v326 = vpop.xlane.xlu0 %325
  %v327 = vmax.f32 %v292, %v326
  %v328 = vsub.f32 %v292, %v327
  %v329 = vmul.f32 %v328, 1.442695
  %v330 = vpow.pop %v329
  %v331 = vsub.f32 %v326, %v327
  %v332 = vmul.f32 %v331, 1.442695
  %v333 = vpow.pop %v332
  %v334 = vmul.f32 %v330, %v300
  %v335 = vadd.f32 %v334, %v333
  %v336 = vmul.f32 %v330, %v303
  %v337 = vmul.f32 %v333, %v322
  %v338 = vadd.f32 %v336, %v337
  %v339 = vpack.c.bf16 %v322, %v322
  %v341 = vsel %vm137, %v339, 0
  %343 = vmatpush.bf16.msra.mxu0 0
  %344 = vmatpush.bf16.msra.mxu0 0
  %345 = vmatpush.bf16.msra.mxu0 0
  %346 = vmatpush.bf16.msra.mxu0 0
  %347 = vmatpush.bf16.msra.mxu0 %v161
  %348 = vmatpush.bf16.msra.mxu0 %v160
  %349 = vmatpush.bf16.msra.mxu0 %v159
  %350 = vmatpush.bf16.msra.mxu0 %v158
  %351 = vmatmul.bf16.gmra.mxu0 %v341
  %v352 = vpop.f32.mrf.mxu0
  %v353 = vadd.f32 0.0, %v352
  %v354 = vpop.f32.mrf.mxu0
  %355 = vdwg.mxu0
  %v356 = vadd.f32 %v119, %v353
  %v357 = vtanh.pop %v356
  %v358 = vmul.f32 %v357, %v134
  %v359 = vsel %vm137, %v358, 0.0
  %360 = vadd.xlane.f32.xlu0 %v359
  %v361 = vpop.xlane.xlu0 %360
  %v362 = vmax.f32 %v327, %v361
  %v363 = vsub.f32 %v327, %v362
  %v364 = vmul.f32 %v363, 1.442695
  %v365 = vpow.pop %v364
  %v366 = vsub.f32 %v361, %v362
  %v367 = vmul.f32 %v366, 1.442695
  %v368 = vpow.pop %v367
  %v369 = vmul.f32 %v365, %v335
  %v370 = vadd.f32 %v369, %v368
  %v371 = vmul.f32 %v365, %v338
  %v372 = vmul.f32 %v368, %v357
  %v373 = vadd.f32 %v371, %v372
  %v374 = vpack.c.bf16 %v357, %v357
  %v376 = vsel %vm137, %v374, 0
  %378 = vmatpush.bf16.msra.mxu0 0
  %379 = vmatpush.bf16.msra.mxu0 0
  %380 = vmatpush.bf16.msra.mxu0 0
  %381 = vmatpush.bf16.msra.mxu0 0
  %382 = vmatpush.bf16.msra.mxu0 %v161
  %383 = vmatpush.bf16.msra.mxu0 %v160
  %384 = vmatpush.bf16.msra.mxu0 %v159
  %385 = vmatpush.bf16.msra.mxu0 %v158
  %386 = vmatmul.bf16.gmra.mxu0 %v376
  %v387 = vpop.f32.mrf.mxu0
  %v388 = vadd.f32 0.0, %v387
  %v389 = vpop.f32.mrf.mxu0
  %390 = vdwg.mxu0
  %v391 = vadd.f32 %v121, %v388
  %v392 = vtanh.pop %v391
  %v393 = vmul.f32 %v392, %v134
  %v394 = vsel %vm137, %v393, 0.0
  %395 = vadd.xlane.f32.xlu0 %v394
  %v396 = vpop.xlane.xlu0 %395
  %v397 = vmax.f32 %v362, %v396
  %v398 = vsub.f32 %v362, %v397
  %v399 = vmul.f32 %v398, 1.442695
  %v400 = vpow.pop %v399
  %v401 = vsub.f32 %v396, %v397
  %v402 = vmul.f32 %v401, 1.442695
  %v403 = vpow.pop %v402
  %v404 = vmul.f32 %v400, %v370
  %v405 = vadd.f32 %v404, %v403
  %v406 = vmul.f32 %v400, %v373
  %v407 = vmul.f32 %v403, %v392
  %v408 = vadd.f32 %v406, %v407
  %v409 = vrcp.pop %v405
  %v410 = vmul.f32 %v408, %v409
  %v411 = vpack.c.bf16 %v410, %v410
  %v412 = vld [vmem:[%s5] sm:$0xf]
  %v413 = vld [vmem:[%s5 + $0x4] sm:$0xf]
  %v414 = vld [vmem:[%s5 + $0x8] sm:$0xf]
  %v415 = vld [vmem:[%s5 + $0xc] sm:$0xf]
  %v416 = vld [vmem:[%s5 + $0x10] sm:$0xf]
  %v417 = vld [vmem:[%s5 + $0x14] sm:$0xf]
  %v418 = vld [vmem:[%s5 + $0x18] sm:$0xf]
  %v419 = vld [vmem:[%s5 + $0x1c] sm:$0xf]
  %v420 = vld [vmem:[%s6] sm:$0x1]
  %v422 = vperm.slane %v420, 0
  %v432 = vunpack.c.l.b16 %v412
  %v433 = vunpack.c.l.b16 %v413
  %v434 = vunpack.c.l.b16 %v414
  %v435 = vunpack.c.l.b16 %v415
  %v436 = vunpack.c.l.b16 %v416
  %v437 = vunpack.c.l.b16 %v417
  %v438 = vunpack.c.l.b16 %v418
  %v439 = vunpack.c.l.b16 %v419
  %v440 = vpack.c.b16 %v433, %v432
  %v441 = vpack.c.b16 %v435, %v434
  %v442 = vpack.c.b16 %v437, %v436
  %v443 = vpack.c.b16 %v439, %v438
  %v449 = vsel %vm137, %v411, 0
  %451 = vmatpush.bf16.msra.mxu0 0
  %452 = vmatpush.bf16.msra.mxu0 0
  %453 = vmatpush.bf16.msra.mxu0 0
  %454 = vmatpush.bf16.msra.mxu0 0
  %455 = vmatpush.bf16.msra.mxu0 %v443
  %456 = vmatpush.bf16.msra.mxu0 %v442
  %457 = vmatpush.bf16.msra.mxu0 %v441
  %458 = vmatpush.bf16.msra.mxu0 %v440
  %459 = vmatmul.bf16.gmra.mxu0 %v449
  %v460 = vpop.f32.mrf.mxu0
  %v461 = vadd.f32 %v422, %v460
  %v462 = vpop.f32.mrf.mxu0
  %463 = vdwg.mxu0
  %v464 = vmax.f32 %v461, 0.0
  %v465 = vpack.c.bf16 %v464, %v464
  %v466 = vld [vmem:[%s7] sm:$0xf]
  %v467 = vld [vmem:[%s7 + $0x4] sm:$0xf]
  %v468 = vld [vmem:[%s7 + $0x8] sm:$0xf]
  %v469 = vld [vmem:[%s7 + $0xc] sm:$0xf]
  %v470 = vld [vmem:[%s8] sm:$0x1]
  %v472 = vperm.slane %v470, 0
  %v478 = vunpack.c.l.b16 %v466
  %v479 = vunpack.c.l.b16 %v467
  %v480 = vunpack.c.l.b16 %v468
  %v481 = vunpack.c.l.b16 %v469
  %v482 = vpack.c.b16 %v479, %v478
  %v483 = vpack.c.b16 %v481, %v480
  %v487 = vsel %vm81, %v465, 0
  %489 = vmatpush.bf16.msra.mxu0 0
  %490 = vmatpush.bf16.msra.mxu0 0
  %491 = vmatpush.bf16.msra.mxu0 0
  %492 = vmatpush.bf16.msra.mxu0 0
  %493 = vmatpush.bf16.msra.mxu0 0
  %494 = vmatpush.bf16.msra.mxu0 0
  %495 = vmatpush.bf16.msra.mxu0 %v483
  %496 = vmatpush.bf16.msra.mxu0 %v482
  %497 = vmatmul.bf16.gmra.mxu0 %v487
  %v498 = vpop.f32.mrf.mxu0
  %v499 = vadd.f32 %v472, %v498
  %v500 = vpop.f32.mrf.mxu0
  %501 = vdwg.mxu0
  %502 = vst [vmem:[%s9] sm:$0xff] %v499
  // Predicated region
  $region38: #{rnn_classifier_with_attention.1} parent=0 // pred_check
    _
  $region39: #{rnn_classifier_with_attention.1} parent=0 // pred_check_branch
    %504 = sbr.rel (0) target = $region41
  $region40: #{rnn_classifier_with_attention.1} parent=0 // pred_region
    _
  $region41: #{rnn_classifier_with_attention.1} parent=0 // pred_fallthru
    _
  // Predicated region
  $region42: #{rnn_classifier_with_attention.1} parent=0 // pred_check
    _
  $region43: #{rnn_classifier_with_attention.1} parent=0 // pred_check_branch
    %506 = sbr.rel (0) target = $region45
  $region44: #{rnn_classifier_with_attention.1} parent=0 // pred_region
    _
  $region45: #{rnn_classifier_with_attention.1} parent=0 // pred_fallthru
    _

</llo_original>
